<compile_context>
chip_gen: v5e
topology: v5e:2x2
jax: 0.10.0
libtpu: 0.0.40
codegen_flags: <defaults>
</compile_context>

<pallas_src>
import math

import jax
import jax.numpy as jnp
from jax import lax
from jax.experimental import pallas as pl
from jax.experimental.pallas import tpu as pltpu


def _conv3x3_kernel(x_ref, halo_ref, w_ref, o_ref, xext_ref, patch_ref):
    """One (batch, H-strip) grid step of the 3x3 'same' conv (no bias).

    x_ref:     (1, Cin, L)        flat strip, L = strip_h * W  (L % 128 == 0)
    halo_ref:  (1, 1, 2, Cin, W)  row above / row below the strip (borders = 0)
    w_ref:     (Cout, 9*Cpad)     packed weights, col = tap*Cpad + ci (ci>=Cin is 0)
    o_ref:     (1, Cout, L)       output strip (flat, lane-dense)
    xext_ref:  (Cin, Wal+L+W)     scratch: [.. | top row | strip | bottom row];
                                  the strip starts at the 128-aligned column Wal
    patch_ref: (9*Cpad, L)        scratch: tap-padded im2col patch (compute dtype)
    """
    cin = x_ref.shape[1]
    lsz = x_ref.shape[2]
    wdim = halo_ref.shape[-1]
    cpad = patch_ref.shape[0] // 9
    cdt = patch_ref.dtype
    dt = x_ref.dtype
    w_al = xext_ref.shape[1] - lsz - wdim      # 128-aligned start of the strip
    off0 = w_al - wdim                         # start of the top halo row

    # Zero-extended flat strip.  The big strip store is lane-aligned; only the
    # two tiny halo-row stores land at unaligned lane offsets.
    xext_ref[:, off0:off0 + wdim] = halo_ref[0, 0, 0]
    xext_ref[:, w_al:w_al + lsz] = x_ref[0]
    xext_ref[:, w_al + lsz:w_al + lsz + wdim] = halo_ref[0, 0, 1]

    # Left/right image-border masks built in-kernel (VPU slack, no HBM input).
    col = lax.broadcasted_iota(jnp.int32, (1, lsz), 1) % wdim
    not_left = (col != 0).astype(dt)           # kw=0 tap is zero at col 0
    not_right = (col != wdim - 1).astype(dt)   # kw=2 tap is zero at col W-1

    pad_rows = jnp.zeros((cpad - cin, lsz), cdt) if cpad > cin else None

    # im2col: one lane-window read per kernel row (kh); the kw = 0 / 2 taps are
    # +/-1 lane rolls of that window (XLU), masked at the image borders (the
    # circular wrap only ever lands on masked lanes).  Each tap slab is padded
    # to Cpad rows so the patch store is one full, sublane-aligned vst.
    for kh in range(3):
        start = off0 + kh * wdim
        base = xext_ref[:, start:start + lsz]                      # (Cin, L) f32
        taps = (
            (0, pltpu.roll(base, 1, axis=1) * not_left),           # kw = 0
            (1, base),                                             # kw = 1
            (2, pltpu.roll(base, lsz - 1, axis=1) * not_right),    # kw = 2
        )
        for kw, win in taps:
            slab = win.astype(cdt)
            if pad_rows is not None:
                slab = jnp.concatenate([slab, pad_rows], axis=0)   # (Cpad, L)
            tap = kh * 3 + kw
            patch_ref[tap * cpad:(tap + 1) * cpad, :] = slab

    # Single folded-K MXU GEMM for the whole strip: (Cout, 9*Cpad) @ (9*Cpad, L).
    acc = jnp.dot(w_ref[...], patch_ref[...], preferred_element_type=jnp.float32)
    o_ref[0] = acc.astype(o_ref.dtype)


def _vmem_capacity_bytes():
    """Per-core VMEM capacity; conservative (v7x = 64 MiB) fallback."""
    try:
        cap = int(pltpu.get_tpu_info().vmem_capacity_bytes)
        if cap >= 16 * 1024 * 1024:
            return cap
    except Exception:
        pass
    return 64 * 1024 * 1024


def _choose_strip(batch, h, w, cin, cout, kpad, cbytes, budget):
    """Largest lane-dense strip whose per-step working set fits `budget` bytes.

    strip_h * W must be a multiple of 128 (lane-dense blocks / unmasked output
    stores).  Per-step VMEM ~= L * per_l + const, where per_l counts the
    double-buffered input/output blocks plus the xext/patch scratch.
    """
    unit = 128 // math.gcd(w, 128)
    w_al = ((w + 127) // 128) * 128
    per_l = (2 * cin + 2 * cout) * 4 + cin * 4 + kpad * cbytes
    const = (2 * (2 * cin * w) * 4            # halo block (double-buffered)
             + 2 * cout * kpad * cbytes       # weight block (double-buffered)
             + cin * (w_al + w) * 4)          # xext halo/pad columns
    # Never go below one lane-dense strip (vmem_limit is raised to fit it).
    avail = max(budget - const, unit * w * per_l)
    h_cap = ((h + unit - 1) // unit) * unit
    strip_h = unit
    while strip_h * 2 <= h_cap and strip_h * 2 * w * per_l <= avail:
        strip_h *= 2
    # Megacore (v7x: 2 TCs): keep >= ~4 grid steps, but never drop a step below
    # ~512 output lanes (measured DMA-efficiency floor), so 1-TC parts never
    # trade tile size for parallelism they don't have.
    while (batch * -(-h // strip_h)) < 4 and strip_h > unit and (strip_h // 2) * w >= 512:
        strip_h //= 2
    h_pad = -(-h // strip_h) * strip_h
    required = const + strip_h * w * per_l
    return strip_h, h_pad, required


def overlap_patch_embed(x_nchw, w_oihw, *, compute_dtype=jnp.bfloat16):
    """Conv2d(in_c, embed_dim, kernel=3, stride=1, padding=1, bias=False).

    compute_dtype is the MXU-operand dtype (im2col patch + packed weights); the
    accumulator and the returned tensor stay float32.  Pass jnp.float32 for a
    bit-exact MXU path.
    """
    n, cin, h, w = x_nchw.shape
    cout = w_oihw.shape[0]
    dt = x_nchw.dtype

    cbytes = jnp.dtype(compute_dtype).itemsize
    # Tap-slab channel padding: a multiple of the sublane tile of the compute
    # dtype (8 rows for f32, 16 for bf16) so every patch store is unmasked.
    sublane_rows = 8 * (4 // cbytes)
    cpad = -(-cin // sublane_rows) * sublane_rows
    kpad = 9 * cpad

    cap = _vmem_capacity_bytes()
    strip_h, h_pad, required = _choose_strip(
        n, h, w, cin, cout, kpad, cbytes, budget=int(cap * 0.45))
    num_strips = h_pad // strip_h
    lsz = strip_h * w
    vmem_limit = min(cap, max(int(cap * 0.75), int(required * 1.5)))

    if h_pad != h:
        x_nchw = jnp.pad(x_nchw, ((0, 0), (0, 0), (0, h_pad - h), (0, 0)))

    # Halo rows (1 above, 1 below each strip); image borders are zeros.
    zrow = jnp.zeros((n, cin, 1, w), dt)
    if num_strips > 1:
        top = jnp.concatenate(
            [zrow, x_nchw[:, :, strip_h - 1:h_pad - 1:strip_h, :]], axis=2)
        bot = jnp.concatenate(
            [x_nchw[:, :, strip_h:h_pad:strip_h, :], zrow], axis=2)
    else:
        top = zrow
        bot = zrow
    halo = jnp.transpose(jnp.stack([top, bot], axis=3), (0, 2, 3, 1, 4))
    # halo: (N, num_strips, 2, Cin, W)

    # Weights -> (Cout, 9*Cpad), col = tap*Cpad + ci with tap = kh*3 + kw; the
    # ci >= Cin columns are zero to match the tap-padded patch layout.
    wq = jnp.transpose(w_oihw, (0, 2, 3, 1)).reshape(cout, 9, cin)
    wq = jnp.pad(wq, ((0, 0), (0, 0), (0, cpad - cin)))
    wq = wq.reshape(cout, kpad).astype(compute_dtype)

    x_flat = x_nchw.reshape(n, cin, h_pad * w)     # free: NCHW is row-major
    w_al = ((w + 127) // 128) * 128

    out_flat = pl.pallas_call(
        _conv3x3_kernel,
        out_shape=jax.ShapeDtypeStruct((n, cout, h_pad * w), dt),
        grid_spec=pltpu.PrefetchScalarGridSpec(
            num_scalar_prefetch=0,
            grid=(n, num_strips),
            in_specs=[
                pl.BlockSpec((1, cin, lsz), lambda b, s: (b, 0, s)),
                pl.BlockSpec((1, 1, 2, cin, w), lambda b, s: (b, s, 0, 0, 0)),
                pl.BlockSpec((cout, kpad), lambda b, s: (0, 0)),
            ],
            out_specs=pl.BlockSpec((1, cout, lsz), lambda b, s: (b, 0, s)),
            scratch_shapes=[
                pltpu.VMEM((cin, w_al + lsz + w), dt),
                pltpu.VMEM((kpad, lsz), compute_dtype),
            ],
        ),
        compiler_params=pltpu.CompilerParams(
            dimension_semantics=("parallel", "parallel"),
            vmem_limit_bytes=vmem_limit,
        ),
    )(x_flat, halo, wq)

    out = out_flat.reshape(n, cout, h_pad, w)      # free: same row-major layout
    if h_pad != h:
        out = out[:, :, :h, :]
    return out


def _reference(x_nchw, w_oihw):
    """Pure-JAX reference (lax conv) for sanity checking."""
    return lax.conv_general_dilated(
        x_nchw, w_oihw, window_strides=(1, 1), padding=((1, 1), (1, 1)),
        dimension_numbers=("NCHW", "OIHW", "NCHW"))


if __name__ == "__main__":
    key = jax.random.PRNGKey(0)
    kx, kw_, kx2, kw2 = jax.random.split(key, 4)

    # Module defaults: in_c=3, embed_dim=48.
    n, in_c, h, w, embed_dim = 2, 3, 16, 16, 48
    x = jax.random.normal(kx, (n, in_c, h, w), dtype=jnp.float32)
    wgt = 0.1 * jax.random.normal(kw_, (embed_dim, in_c, 3, 3), dtype=jnp.float32)
    ref = jax.block_until_ready(_reference(x, wgt))

    # Default fast path: bf16 MXU operands, f32 accumulation (tolerance widened
    # for the bf16 operand rounding; expected max err here is ~1e-2).
    out = jax.block_until_ready(overlap_patch_embed(x, wgt))
    assert out.shape == (n, embed_dim, h, w), out.shape
    err = float(jnp.max(jnp.abs(out - ref)))
    assert jnp.allclose(out, ref, atol=3e-2, rtol=3e-2), f"bf16 mismatch, max err {err}"

    # Exact f32 MXU path.
    out32 = jax.block_until_ready(
        overlap_patch_embed(x, wgt, compute_dtype=jnp.float32))
    err32 = float(jnp.max(jnp.abs(out32 - ref)))
    assert jnp.allclose(out32, ref, atol=2e-4, rtol=2e-4), f"f32 mismatch, max err {err32}"

    # Second shape: multi-strip halos, H padding, Cin not a sublane multiple,
    # W not dividing 128.
    n2, c2, h2, w2, e2 = 1, 5, 40, 24, 32
    x2 = jax.random.normal(kx2, (n2, c2, h2, w2), dtype=jnp.float32)
    wgt2 = 0.1 * jax.random.normal(kw2, (e2, c2, 3, 3), dtype=jnp.float32)
    out2 = jax.block_until_ready(overlap_patch_embed(x2, wgt2))
    ref2 = jax.block_until_ready(_reference(x2, wgt2))
    assert out2.shape == (n2, e2, h2, w2), out2.shape
    err2 = float(jnp.max(jnp.abs(out2 - ref2)))
    assert jnp.allclose(out2, ref2, atol=3e-2, rtol=3e-2), f"bf16 mismatch 2, max err {err2}"

    print("KERNEL_OK")
</pallas_src>

<mosaic_0001>
module attributes {stable_mosaic.version = 11 : i64} {
  func.func @_conv3x3_kernel(%arg0: i32, %arg1: i32, %arg2: memref<1x3x256xf32, #tpu.memory_space<vmem>>, %arg3: memref<1x1x2x3x16xf32, #tpu.memory_space<vmem>>, %arg4: memref<48x144xbf16, #tpu.memory_space<vmem>>, %arg5: memref<1x48x256xf32, #tpu.memory_space<vmem>>, %arg6: memref<3x400xf32, #tpu.memory_space<vmem>>, %arg7: memref<144x256xbf16, #tpu.memory_space<vmem>>) attributes {dimension_semantics = [#tpu.dimension_semantics<parallel>, #tpu.dimension_semantics<parallel>], iteration_bounds = array<i64: 2, 1>, scalar_prefetch = 0 : i64, scratch_operands = 2 : i64, tpu.core_type = #tpu.core_type<tc>, window_params = [{transform_indices = @transform_0, window_bounds = array<i64: 1, 3, 256>}, {transform_indices = @transform_1, window_bounds = array<i64: 1, 1, 2, 3, 16>}, {pipeline_mode = #tpu.pipeline_mode<synchronous>, transform_indices = @transform_2, window_bounds = array<i64: 48, 144>}, {transform_indices = @transform_3, window_bounds = array<i64: 1, 48, 256>}]} {
    %c0 = arith.constant 0 : index
    %c0_0 = arith.constant 0 : index
    %c0_1 = arith.constant 0 : index
    %c0_2 = arith.constant 0 : index
    %c0_3 = arith.constant 0 : index
    %0 = vector.load %arg3[%c0, %c0_0, %c0_1, %c0_2, %c0_3] : memref<1x1x2x3x16xf32, #tpu.memory_space<vmem>>, vector<1x1x1x3x16xf32>
    %1 = vector.shape_cast %0 : vector<1x1x1x3x16xf32> to vector<3x16xf32>
    %c0_4 = arith.constant 0 : index
    %c112 = arith.constant 112 : index
    %2 = vector.load %arg6[%c0_4, %c112] : memref<3x400xf32, #tpu.memory_space<vmem>>, vector<3x16xf32>
    tpu.vector_store %arg6[%c0_4, %c112], %1 {strides = array<i32>} : memref<3x400xf32, #tpu.memory_space<vmem>>, vector<3x16xf32>,
    %c0_5 = arith.constant 0 : index
    %c0_6 = arith.constant 0 : index
    %c0_7 = arith.constant 0 : index
    %3 = vector.load %arg2[%c0_5, %c0_6, %c0_7] : memref<1x3x256xf32, #tpu.memory_space<vmem>>, vector<1x3x256xf32>
    %4 = vector.shape_cast %3 : vector<1x3x256xf32> to vector<3x256xf32>
    %c0_8 = arith.constant 0 : index
    %c128 = arith.constant 128 : index
    %5 = vector.load %arg6[%c0_8, %c128] : memref<3x400xf32, #tpu.memory_space<vmem>>, vector<3x256xf32>
    tpu.vector_store %arg6[%c0_8, %c128], %4 {strides = array<i32>} : memref<3x400xf32, #tpu.memory_space<vmem>>, vector<3x256xf32>,
    %c0_9 = arith.constant 0 : index
    %c0_10 = arith.constant 0 : index
    %c1 = arith.constant 1 : index
    %c0_11 = arith.constant 0 : index
    %c0_12 = arith.constant 0 : index
    %6 = vector.load %arg3[%c0_9, %c0_10, %c1, %c0_11, %c0_12] : memref<1x1x2x3x16xf32, #tpu.memory_space<vmem>>, vector<1x1x1x3x16xf32>
    %7 = vector.shape_cast %6 : vector<1x1x1x3x16xf32> to vector<3x16xf32>
    %c0_13 = arith.constant 0 : index
    %c384 = arith.constant 384 : index
    %8 = vector.load %arg6[%c0_13, %c384] : memref<3x400xf32, #tpu.memory_space<vmem>>, vector<3x16xf32>
    tpu.vector_store %arg6[%c0_13, %c384], %7 {strides = array<i32>} : memref<3x400xf32, #tpu.memory_space<vmem>>, vector<3x16xf32>,
    %9 = tpu.iota {dimensions = array<i32: 1>} : vector<1x256xi32>
    %c16_i32 = arith.constant 16 : i32
    %c0_i32 = arith.constant 0 : i32
    %10 = arith.cmpi eq, %c16_i32, %c0_i32 : i32
    %c1_i32 = arith.constant 1 : i32
    %11 = arith.select %10, %c1_i32, %c16_i32 : i32
    %12 = vector.broadcast %11 : i32 to vector<1x256xi32>
    %13 = arith.remsi %9, %12 : vector<1x256xi32>
    %c0_i32_14 = arith.constant 0 : i32
    %14 = vector.broadcast %c0_i32_14 : i32 to vector<1x256xi32>
    %15 = arith.cmpi ne, %13, %14 : vector<1x256xi32>
    %c0_i32_15 = arith.constant 0 : i32
    %16 = vector.broadcast %c0_i32_15 : i32 to vector<1x256xi32>
    %17 = arith.cmpi slt, %13, %16 : vector<1x256xi32>
    %c0_i32_16 = arith.constant 0 : i32
    %18 = arith.cmpi slt, %11, %c0_i32_16 : i32
    %19 = vector.broadcast %18 : i1 to vector<1x256xi1>
    %20 = vector.broadcast %19 : vector<1x256xi1> to vector<1x256xi1>
    %21 = arith.xori %17, %20 : vector<1x256xi1>
    %22 = arith.andi %21, %15 : vector<1x256xi1>
    %23 = vector.broadcast %11 : i32 to vector<1x256xi32>
    %24 = arith.addi %13, %23 : vector<1x256xi32>
    %25 = arith.select %22, %24, %13 : vector<1x256xi1>, vector<1x256xi32>
    %c0_i32_17 = arith.constant 0 : i32
    %26 = vector.broadcast %c0_i32_17 : i32 to vector<1x256xi32>
    %27 = arith.cmpi ne, %25, %26 : vector<1x256xi32>
    %28 = arith.extui %27 : vector<1x256xi1> to vector<1x256xi32>
    %29 = arith.sitofp %28 : vector<1x256xi32> to vector<1x256xf32>
    %c15_i32 = arith.constant 15 : i32
    %30 = vector.broadcast %c15_i32 : i32 to vector<1x256xi32>
    %31 = arith.cmpi ne, %25, %30 : vector<1x256xi32>
    %32 = arith.extui %31 : vector<1x256xi1> to vector<1x256xi32>
    %33 = arith.sitofp %32 : vector<1x256xi32> to vector<1x256xf32>
    %cst = arith.constant 0.000000e+00 : bf16
    %34 = vector.broadcast %cst : bf16 to vector<13x256xbf16>
    %c0_18 = arith.constant 0 : index
    %c112_19 = arith.constant 112 : index
    %35 = vector.load %arg6[%c0_18, %c112_19] : memref<3x400xf32, #tpu.memory_space<vmem>>, vector<3x256xf32>
    %c1_i32_20 = arith.constant 1 : i32
    %36 = tpu.dynamic_rotate %35 by %c1_i32_20 dim 1 : vector<3x256xf32>, i32 -> vector<3x256xf32>
    %37 = vector.broadcast %29 : vector<1x256xf32> to vector<3x256xf32>
    %38 = arith.mulf %36, %37 : vector<3x256xf32>
    %c255_i32 = arith.constant 255 : i32
    %39 = tpu.dynamic_rotate %35 by %c255_i32 dim 1 : vector<3x256xf32>, i32 -> vector<3x256xf32>
    %40 = vector.broadcast %33 : vector<1x256xf32> to vector<3x256xf32>
    %41 = arith.mulf %39, %40 : vector<3x256xf32>
    %42 = arith.truncf %38 : vector<3x256xf32> to vector<3x256xbf16>
    %43 = tpu.concatenate %42, %34 in 0 : vector<3x256xbf16>, vector<13x256xbf16> -> vector<16x256xbf16>
    %c0_21 = arith.constant 0 : index
    %c0_22 = arith.constant 0 : index
    %44 = vector.load %arg7[%c0_21, %c0_22] : memref<144x256xbf16, #tpu.memory_space<vmem>>, vector<16x256xbf16>
    tpu.vector_store %arg7[%c0_21, %c0_22], %43 {strides = array<i32>} : memref<144x256xbf16, #tpu.memory_space<vmem>>, vector<16x256xbf16>,
    %45 = arith.truncf %35 : vector<3x256xf32> to vector<3x256xbf16>
    %46 = tpu.concatenate %45, %34 in 0 : vector<3x256xbf16>, vector<13x256xbf16> -> vector<16x256xbf16>
    %c16 = arith.constant 16 : index
    %c0_23 = arith.constant 0 : index
    %47 = vector.load %arg7[%c16, %c0_23] : memref<144x256xbf16, #tpu.memory_space<vmem>>, vector<16x256xbf16>
    tpu.vector_store %arg7[%c16, %c0_23], %46 {strides = array<i32>} : memref<144x256xbf16, #tpu.memory_space<vmem>>, vector<16x256xbf16>,
    %48 = arith.truncf %41 : vector<3x256xf32> to vector<3x256xbf16>
    %49 = tpu.concatenate %48, %34 in 0 : vector<3x256xbf16>, vector<13x256xbf16> -> vector<16x256xbf16>
    %c32 = arith.constant 32 : index
    %c0_24 = arith.constant 0 : index
    %50 = vector.load %arg7[%c32, %c0_24] : memref<144x256xbf16, #tpu.memory_space<vmem>>, vector<16x256xbf16>
    tpu.vector_store %arg7[%c32, %c0_24], %49 {strides = array<i32>} : memref<144x256xbf16, #tpu.memory_space<vmem>>, vector<16x256xbf16>,
    %c0_25 = arith.constant 0 : index
    %c128_26 = arith.constant 128 : index
    %51 = vector.load %arg6[%c0_25, %c128_26] : memref<3x400xf32, #tpu.memory_space<vmem>>, vector<3x256xf32>
    %c1_i32_27 = arith.constant 1 : i32
    %52 = tpu.dynamic_rotate %51 by %c1_i32_27 dim 1 : vector<3x256xf32>, i32 -> vector<3x256xf32>
    %53 = vector.broadcast %29 : vector<1x256xf32> to vector<3x256xf32>
    %54 = arith.mulf %52, %53 : vector<3x256xf32>
    %c255_i32_28 = arith.constant 255 : i32
    %55 = tpu.dynamic_rotate %51 by %c255_i32_28 dim 1 : vector<3x256xf32>, i32 -> vector<3x256xf32>
    %56 = vector.broadcast %33 : vector<1x256xf32> to vector<3x256xf32>
    %57 = arith.mulf %55, %56 : vector<3x256xf32>
    %58 = arith.truncf %54 : vector<3x256xf32> to vector<3x256xbf16>
    %59 = tpu.concatenate %58, %34 in 0 : vector<3x256xbf16>, vector<13x256xbf16> -> vector<16x256xbf16>
    %c48 = arith.constant 48 : index
    %c0_29 = arith.constant 0 : index
    %60 = vector.load %arg7[%c48, %c0_29] : memref<144x256xbf16, #tpu.memory_space<vmem>>, vector<16x256xbf16>
    tpu.vector_store %arg7[%c48, %c0_29], %59 {strides = array<i32>} : memref<144x256xbf16, #tpu.memory_space<vmem>>, vector<16x256xbf16>,
    %61 = arith.truncf %51 : vector<3x256xf32> to vector<3x256xbf16>
    %62 = tpu.concatenate %61, %34 in 0 : vector<3x256xbf16>, vector<13x256xbf16> -> vector<16x256xbf16>
    %c64 = arith.constant 64 : index
    %c0_30 = arith.constant 0 : index
    %63 = vector.load %arg7[%c64, %c0_30] : memref<144x256xbf16, #tpu.memory_space<vmem>>, vector<16x256xbf16>
    tpu.vector_store %arg7[%c64, %c0_30], %62 {strides = array<i32>} : memref<144x256xbf16, #tpu.memory_space<vmem>>, vector<16x256xbf16>,
    %64 = arith.truncf %57 : vector<3x256xf32> to vector<3x256xbf16>
    %65 = tpu.concatenate %64, %34 in 0 : vector<3x256xbf16>, vector<13x256xbf16> -> vector<16x256xbf16>
    %c80 = arith.constant 80 : index
    %c0_31 = arith.constant 0 : index
    %66 = vector.load %arg7[%c80, %c0_31] : memref<144x256xbf16, #tpu.memory_space<vmem>>, vector<16x256xbf16>
    tpu.vector_store %arg7[%c80, %c0_31], %65 {strides = array<i32>} : memref<144x256xbf16, #tpu.memory_space<vmem>>, vector<16x256xbf16>,
    %c0_32 = arith.constant 0 : index
    %c144 = arith.constant 144 : index
    %67 = vector.load %arg6[%c0_32, %c144] : memref<3x400xf32, #tpu.memory_space<vmem>>, vector<3x256xf32>
    %c1_i32_33 = arith.constant 1 : i32
    %68 = tpu.dynamic_rotate %67 by %c1_i32_33 dim 1 : vector<3x256xf32>, i32 -> vector<3x256xf32>
    %69 = vector.broadcast %29 : vector<1x256xf32> to vector<3x256xf32>
    %70 = arith.mulf %68, %69 : vector<3x256xf32>
    %c255_i32_34 = arith.constant 255 : i32
    %71 = tpu.dynamic_rotate %67 by %c255_i32_34 dim 1 : vector<3x256xf32>, i32 -> vector<3x256xf32>
    %72 = vector.broadcast %33 : vector<1x256xf32> to vector<3x256xf32>
    %73 = arith.mulf %71, %72 : vector<3x256xf32>
    %74 = arith.truncf %70 : vector<3x256xf32> to vector<3x256xbf16>
    %75 = tpu.concatenate %74, %34 in 0 : vector<3x256xbf16>, vector<13x256xbf16> -> vector<16x256xbf16>
    %c96 = arith.constant 96 : index
    %c0_35 = arith.constant 0 : index
    %76 = vector.load %arg7[%c96, %c0_35] : memref<144x256xbf16, #tpu.memory_space<vmem>>, vector<16x256xbf16>
    tpu.vector_store %arg7[%c96, %c0_35], %75 {strides = array<i32>} : memref<144x256xbf16, #tpu.memory_space<vmem>>, vector<16x256xbf16>,
    %77 = arith.truncf %67 : vector<3x256xf32> to vector<3x256xbf16>
    %78 = tpu.concatenate %77, %34 in 0 : vector<3x256xbf16>, vector<13x256xbf16> -> vector<16x256xbf16>
    %c112_36 = arith.constant 112 : index
    %c0_37 = arith.constant 0 : index
    %79 = vector.load %arg7[%c112_36, %c0_37] : memref<144x256xbf16, #tpu.memory_space<vmem>>, vector<16x256xbf16>
    tpu.vector_store %arg7[%c112_36, %c0_37], %78 {strides = array<i32>} : memref<144x256xbf16, #tpu.memory_space<vmem>>, vector<16x256xbf16>,
    %80 = arith.truncf %73 : vector<3x256xf32> to vector<3x256xbf16>
    %81 = tpu.concatenate %80, %34 in 0 : vector<3x256xbf16>, vector<13x256xbf16> -> vector<16x256xbf16>
    %c128_38 = arith.constant 128 : index
    %c0_39 = arith.constant 0 : index
    %82 = vector.load %arg7[%c128_38, %c0_39] : memref<144x256xbf16, #tpu.memory_space<vmem>>, vector<16x256xbf16>
    tpu.vector_store %arg7[%c128_38, %c0_39], %81 {strides = array<i32>} : memref<144x256xbf16, #tpu.memory_space<vmem>>, vector<16x256xbf16>,
    %c0_40 = arith.constant 0 : index
    %c0_41 = arith.constant 0 : index
    %83 = vector.load %arg4[%c0_40, %c0_41] : memref<48x144xbf16, #tpu.memory_space<vmem>>, vector<48x144xbf16>
    %c0_42 = arith.constant 0 : index
    %c0_43 = arith.constant 0 : index
    %84 = vector.load %arg7[%c0_42, %c0_43] : memref<144x256xbf16, #tpu.memory_space<vmem>>, vector<144x256xbf16>
    %cst_44 = arith.constant dense<0.000000e+00> : vector<48x256xf32>
    %85 = tpu.matmul %83, %84, %cst_44 {dimension_numbers = #tpu.dot_dimension_numbers<[1], [0], [0], [1], [0, 0, 1, 1], [], []>} : vector<48x144xbf16>, vector<144x256xbf16>, vector<48x256xf32> -> vector<48x256xf32>
    %c0_45 = arith.constant 0 : index
    %c0_46 = arith.constant 0 : index
    %c0_47 = arith.constant 0 : index
    %86 = vector.load %arg5[%c0_45, %c0_46, %c0_47] : memref<1x48x256xf32, #tpu.memory_space<vmem>>, vector<1x48x256xf32>
    %87 = vector.shape_cast %86 : vector<1x48x256xf32> to vector<48x256xf32>
    %88 = vector.shape_cast %85 : vector<48x256xf32> to vector<1x48x256xf32>
    tpu.vector_store %arg5[%c0_45, %c0_46, %c0_47], %88 {strides = array<i32>} : memref<1x48x256xf32, #tpu.memory_space<vmem>>, vector<1x48x256xf32>,
    return
  }
  func.func @transform_0(%arg0: i32, %arg1: i32) -> (i32, i32, i32) {
    %c0_i32 = arith.constant 0 : i32
    %c0_i32_0 = arith.constant 0 : i32
    return %arg0, %c0_i32, %arg1 : i32, i32, i32
  }
  func.func @transform_1(%arg0: i32, %arg1: i32) -> (i32, i32, i32, i32, i32) {
    %c0_i32 = arith.constant 0 : i32
    %c0_i32_0 = arith.constant 0 : i32
    %c0_i32_1 = arith.constant 0 : i32
    %c0_i32_2 = arith.constant 0 : i32
    return %arg0, %arg1, %c0_i32, %c0_i32_0, %c0_i32_1 : i32, i32, i32, i32, i32
  }
  func.func @transform_2(%arg0: i32, %arg1: i32) -> (i32, i32) {
    %c0_i32 = arith.constant 0 : i32
    %c0_i32_0 = arith.constant 0 : i32
    %c0_i32_1 = arith.constant 0 : i32
    return %c0_i32, %c0_i32_0 : i32, i32
  }
  func.func @transform_3(%arg0: i32, %arg1: i32) -> (i32, i32, i32) {
    %c0_i32 = arith.constant 0 : i32
    %c0_i32_0 = arith.constant 0 : i32
    return %arg0, %c0_i32, %arg1 : i32, i32, i32
  }
}

</mosaic_0001>

<llo_original>
// kernel: tpu_custom_call.1
$region0: #{tpu_custom_call.1}
  #allocation0 [shape = 'u32[]', space=smem, size = 0x4, offset = 0x4, fixed_abs, tag = 'smem constant byte address 0x4 - core index']
  #allocation1 [shape = 'u32[72,128]{1,0:T(1,128)}', space=vmem, size = 0x9000, scoped, tag = 'internal scratch']
  #allocation2 [shape = 'f32[3,400]{1,0:T(4,128)}', space=vmem, size = 0x2000, scoped, tag = 'scratch operand']
  #allocation3 [shape = 'bf16[144,256]{1,0:T(8,128)(2,1)}', space=vmem, size = 0x12000, scoped, tag = 'scratch operand']
  %s0 = inlined_call_operand.vmem [shape: f32[2,3,256], index: 0, kind: input, shape index: {}]
  %s1 = inlined_call_operand.vmem [shape: f32[2,1,2,3,16], index: 1, kind: input, shape index: {}]
  %s2 = inlined_call_operand.hbm [shape: bf16[48,144], index: 2, kind: input, shape index: {}]
  %s3 = inlined_call_operand.hbm [shape: f32[2,48,256], index: 3, kind: output, shape index: {}]
  %s4 = sld [smem:[#allocation0]]
  $region49: #{tpu_custom_call.1} parent=0
    _
  %s6 = ssub.s32 1, %s4
  %s7 = scalar_select 0, %s6, %s4
  $region1: #{tpu_custom_call.1} parent=0
    #allocation4 [shape = 'u8[24576]{0}', space=vmem, size = 0x6000, scoped, tag = 'input window, operand 2, single buffered']
    #allocation5 [shape = 's32[2]{0}', space=sflag, size = 0x8, scoped, tag = 'scoped memory for tpu_custom_call.1']
    #allocation6 [shape = 's32[2]{0}', space=sflag, size = 0x8, scoped, tag = 'scoped memory for tpu_custom_call.1']
    #allocation7 [shape = 'u8[98304]{0}', space=vmem, size = 0x18000, scoped, tag = 'output window, operand 0']
    %8 = vsyncpa [#allocation5], 0
    %9 = vsyncpa [#allocation6], 0
    %s10 = scalar_lea.sflag [#allocation6], 1
    %11 = vsyncpa %s10, 0
    loop: start=0, step=1, limit=4
    $region2: #{tpu_custom_call.1} parent=1 // loop_pre_header
      _
    $region3: #{tpu_custom_call.1} parent=1 // loop_header
      %s13 = sphi 0, %s17
      %p14 = scmp.ge.s32.totalorder %s13, 4
      %s20 = sphi 0, %s32
      %s21 = sphi 0, %s28
      %s22 = sphi 0, %s20
      %s23 = sphi 0, %s21
      %s24 = sphi 0, %s22
      %s25 = sphi 0, %s23
      %s37 = sphi 0, %s39
      %s40 = sphi 0, %s37
      %s41 = sphi 0, %s40
      %s57 = sphi 0, %s41
      %s65 = sphi 0, %s67
      %s68 = sphi 0, %s65
      %s69 = sphi 0, %s68
      %s85 = sphi 0, %s69
      %s89 = sphi 0, %s89
      %s91 = sphi 0, %s89
      %s92 = sphi 0, %s91
      %s106 = sphi 0, %s92
      %s114 = sphi 0, %s116
      %s117 = sphi 0, %s114
      %s118 = sphi 0, %s117
      %s134 = sphi 0, %s118
    $region4: #{tpu_custom_call.1} parent=1 // loop_header_branch
      %16 = sbr.rel (%p14) target = $region8
    $region5: #{tpu_custom_call.1} parent=1 // loop_body
      %s18 = ssub.s32 %s13, 1
      %s19 = ssub.s32 %s13, 2
      %s26 = sadd.s32 1, %s21
      %p27 = scmp.ge.s32.totalorder %s26, 1
      %s28 = scalar_select %p27, 0, %s26
      %s29 = sadd.s32 1, %s20
      %s30 = scalar_select %p27, %s29, %s20
      %p31 = scmp.ge.s32.totalorder %s30, 2
      %s32 = scalar_select %p31, 0, %s30
      %s33 = ssub.s32 %s20, %s32
      %s34 = ssub.s32 %s21, %s28
      %s35 = sor.u32 %s33, %s34
      %p36 = scmp.eq.s32.totalorder %s35, 0
      %s38 = sadd.s32 %s37, 1
      %s39 = scalar_select %p36, %s37, %s38
      %p42 = pneg %p36
      %p43 = scmp.eq.s32.totalorder %s13, 1
      %p44 = por %p42, %p43
      %p45 = scmp.ne.s32.totalorder %s37, %s40
      %p46 = scmp.eq.s32.totalorder %s13, 0
      %p47 = por %p45, %p46
      %p48 = scmp.ne.s32.totalorder %s37, %s40
      %p49 = scmp.eq.s32.totalorder %s18, 1
      %p50 = por %p48, %p49
      %p51 = scmp.ne.s32.totalorder %s40, %s41
      %p52 = scmp.eq.s32.totalorder %s18, 0
      %p53 = por %p51, %p52
      %p54 = scmp.ne.s32.totalorder %s40, %s41
      %p55 = scmp.eq.s32.totalorder %s19, 1
      %p56 = por %p54, %p55
      %p58 = scmp.ne.s32.totalorder %s41, %s57
      %p59 = scmp.eq.s32.totalorder %s19, 0
      %p60 = por %p58, %p59
      %s61 = ssub.s32 %s20, %s32
      %s62 = ssub.s32 %s21, %s28
      %s63 = sor.u32 %s61, %s62
      %p64 = scmp.eq.s32.totalorder %s63, 0
      %s66 = sadd.s32 %s65, 1
      %s67 = scalar_select %p64, %s65, %s66
      %p70 = pneg %p64
      %p71 = scmp.eq.s32.totalorder %s13, 1
      %p72 = por %p70, %p71
      %p73 = scmp.ne.s32.totalorder %s65, %s68
      %p74 = scmp.eq.s32.totalorder %s13, 0
      %p75 = por %p73, %p74
      %p76 = scmp.ne.s32.totalorder %s65, %s68
      %p77 = scmp.eq.s32.totalorder %s18, 1
      %p78 = por %p76, %p77
      %p79 = scmp.ne.s32.totalorder %s68, %s69
      %p80 = scmp.eq.s32.totalorder %s18, 0
      %p81 = por %p79, %p80
      %p82 = scmp.ne.s32.totalorder %s68, %s69
      %p83 = scmp.eq.s32.totalorder %s19, 1
      %p84 = por %p82, %p83
      %p86 = scmp.ne.s32.totalorder %s69, %s85
      %p87 = scmp.eq.s32.totalorder %s19, 0
      %p88 = por %p86, %p87
      %s90 = sadd.s32 %s89, 1
      %p93 = scmp.eq.s32.totalorder %s13, 1
      %p94 = scmp.ne.s32.totalorder %s89, %s91
      %p95 = scmp.eq.s32.totalorder %s13, 0
      %p96 = por %p94, %p95
      %p97 = scmp.ne.s32.totalorder %s89, %s91
      %p98 = scmp.eq.s32.totalorder %s18, 1
      %p99 = por %p97, %p98
      %p100 = scmp.ne.s32.totalorder %s91, %s92
      %p101 = scmp.eq.s32.totalorder %s18, 0
      %p102 = por %p100, %p101
      %p103 = scmp.ne.s32.totalorder %s91, %s92
      %p104 = scmp.eq.s32.totalorder %s19, 1
      %p105 = por %p103, %p104
      %p107 = scmp.ne.s32.totalorder %s92, %s106
      %p108 = scmp.eq.s32.totalorder %s19, 0
      %p109 = por %p107, %p108
      %s110 = ssub.s32 %s20, %s32
      %s111 = ssub.s32 %s21, %s28
      %s112 = sor.u32 %s110, %s111
      %p113 = scmp.eq.s32.totalorder %s112, 0
      %s115 = sadd.s32 %s114, 1
      %s116 = scalar_select %p113, %s114, %s115
      %p119 = pneg %p113
      %p120 = scmp.eq.s32.totalorder %s13, 1
      %p121 = por %p119, %p120
      %p122 = scmp.ne.s32.totalorder %s114, %s117
      %p123 = scmp.eq.s32.totalorder %s13, 0
      %p124 = por %p122, %p123
      %p125 = scmp.ne.s32.totalorder %s114, %s117
      %p126 = scmp.eq.s32.totalorder %s18, 1
      %p127 = por %p125, %p126
      %p128 = scmp.ne.s32.totalorder %s117, %s118
      %p129 = scmp.eq.s32.totalorder %s18, 0
      %p130 = por %p128, %p129
      %p131 = scmp.ne.s32.totalorder %s117, %s118
      %p132 = scmp.eq.s32.totalorder %s19, 1
      %p133 = por %p131, %p132
      %p135 = scmp.ne.s32.totalorder %s118, %s134
      %p136 = scmp.eq.s32.totalorder %s19, 0
      %p137 = por %p135, %p136
      %p138 = scmp.le.s32.totalorder 1, %s13
      %p139 = scmp.lt.s32.totalorder %s13, 3
      %p140 = pnand %p138, %p139
      %p141 = pneg %p140
      // Predicated region
      $region9: #{tpu_custom_call.1} parent=5 // pred_check
        _
      $region10: #{tpu_custom_call.1} parent=5 // pred_check_branch
        %143 = sbr.rel (%p140) target = $region12
      $region11: #{tpu_custom_call.1} parent=5 // pred_region
        %s144 = ssub.s32 %s13, 1
        // Predicated region
        $region13: #{tpu_custom_call.1} parent=11 // pred_check
          %p145 = pneg %p102
        $region14: #{tpu_custom_call.1} parent=11 // pred_check_branch
          %147 = sbr.rel (%p145) target = $region16
        $region15: #{tpu_custom_call.1} parent=11 // pred_region
          %149 = vsyncadd [#allocation5], 0
          %s150 = sshll.u32 %s2, 4
          %s151 = int_to_ptr.hbm [resolvable:$true] %s150
          %s152 = sshll.u32 [#allocation4], 4
          %s153 = int_to_ptr.vmem [resolvable:$true] %s152
          %158 = dma.hbm_to_vmem [thread:$0]  %s151, 768, %s153, [#allocation5], 128, 128, 8
        $region16: #{tpu_custom_call.1} parent=11 // pred_fallthru
          _
      $region12: #{tpu_custom_call.1} parent=5 // pred_fallthru
        _
      %p159 = scmp.lt.s32.totalorder %s13, 2
      // Predicated region
      $region17: #{tpu_custom_call.1} parent=5 // pred_check
        %p160 = pneg %p159
      $region18: #{tpu_custom_call.1} parent=5 // pred_check_branch
        %162 = sbr.rel (%p160) target = $region20
      $region19: #{tpu_custom_call.1} parent=5 // pred_region
        // Predicated region
        $region21: #{tpu_custom_call.1} parent=19 // pred_check
          %p163 = pneg %p47
        $region22: #{tpu_custom_call.1} parent=19 // pred_check_branch
          %165 = sbr.rel (%p163) target = $region24
        $region23: #{tpu_custom_call.1} parent=19 // pred_region
          %s166 = smul.u32 2, %s21
          %p167 = scmp.lt.s32.totalorder %s20, 1
          %s168 = scalar_select %p167, %s20, 1
          %p169 = scmp.lt.s32.totalorder %s166, 1
          %s170 = scalar_select %p169, %s166, 1
          %s171 = smul.addr %s168, 2
          %s172 = sadd.s32 %s170, %s171
          %s173 = smul.addr %s172, 4
          %s174 = scalar_lea.vmem %s0, %s173
          %s175 = smul.u32 2, %s21
        $region24: #{tpu_custom_call.1} parent=19 // pred_fallthru
          _
        // Predicated region
        $region25: #{tpu_custom_call.1} parent=19 // pred_check
          %p176 = pneg %p75
        $region26: #{tpu_custom_call.1} parent=19 // pred_check_branch
          %178 = sbr.rel (%p176) target = $region28
        $region27: #{tpu_custom_call.1} parent=19 // pred_region
          %p179 = scmp.lt.s32.totalorder %s20, 1
          %s180 = scalar_select %p179, %s20, 1
          %p181 = scmp.lt.s32.totalorder %s21, 0
          %s182 = scalar_select %p181, %s21, 0
          %s183 = smul.addr %s182, 2
          %s184 = smul.addr %s180, 2
          %s185 = sadd.s32 %s183, %s184
          %s186 = smul.addr %s185, 4
          %s187 = scalar_lea.vmem %s1, %s186
        $region28: #{tpu_custom_call.1} parent=19 // pred_fallthru
          _
      $region20: #{tpu_custom_call.1} parent=5 // pred_fallthru
        _
      %p188 = scmp.le.s32.totalorder 1, %s13
      %p189 = scmp.lt.s32.totalorder %s13, 3
      %p190 = pnand %p188, %p189
      %p191 = pneg %p190
      // Predicated region
      $region29: #{tpu_custom_call.1} parent=5 // pred_check
        _
      $region30: #{tpu_custom_call.1} parent=5 // pred_check_branch
        %193 = sbr.rel (%p190) target = $region32
      $region31: #{tpu_custom_call.1} parent=5 // pred_region
        %s194 = ssub.s32 %s13, 1
        // Predicated region
        $region33: #{tpu_custom_call.1} parent=31 // pred_check
          %p195 = pneg %p102
        $region34: #{tpu_custom_call.1} parent=31 // pred_check_branch
          %197 = sbr.rel (%p195) target = $region36
        $region35: #{tpu_custom_call.1} parent=31 // pred_region
          %199 = dma.done [#allocation5], 768
        $region36: #{tpu_custom_call.1} parent=31 // pred_fallthru
          _
        %s200 = smul.u32 2, %s23
        %p201 = scmp.lt.s32.totalorder %s22, 1
        %s202 = scalar_select %p201, %s22, 1
        %p203 = scmp.lt.s32.totalorder %s200, 1
        %s204 = scalar_select %p203, %s200, 1
        %s205 = smul.addr %s202, 2
        %s206 = sadd.s32 %s204, %s205
        %s207 = smul.addr %s206, 4
        %s208 = scalar_lea.vmem %s0, %s207
        %p209 = pneg %p53
        %p210 = pneg %p50
        %p211 = scmp.lt.s32.totalorder %s22, 1
        %s212 = scalar_select %p211, %s22, 1
        %p213 = scmp.lt.s32.totalorder %s23, 0
        %s214 = scalar_select %p213, %s23, 0
        %s215 = smul.addr %s214, 2
        %s216 = smul.addr %s212, 2
        %s217 = sadd.s32 %s215, %s216
        %s218 = smul.addr %s217, 4
        %s219 = scalar_lea.vmem %s1, %s218
        %p220 = pneg %p81
        %p221 = pneg %p78
        %p222 = pneg %p102
        %p223 = pneg %p99
        %p224 = pneg %p130
        %p225 = pneg %p127
        %s226 = sand.u32 %s117, 1
        %s227 = scalar_lea.sflag [#allocation6], %s226
        %s228 = sand.u32 %s117, 1
        %s229 = smul.addr %s228, 96
        %s230 = scalar_lea.vmem [#allocation7], %s229
        %s231 = smul.u32 2, %s23
        %p232 = scmp.lt.s32.totalorder %s22, 1
        %s233 = scalar_select %p232, %s22, 1
        %p234 = scmp.lt.s32.totalorder %s231, 1
        %s235 = scalar_select %p234, %s231, 1
        %s236 = smul.addr %s233, 2
        %s237 = sadd.s32 %s235, %s236
        %s238 = smul.addr %s237, 4
        %s239 = scalar_lea.vmem %s0, %s238
        %s240 = smul.u32 2, %s23
        %p241 = scmp.lt.s32.totalorder %s22, 1
        %s242 = scalar_select %p241, %s22, 1
        %p243 = scmp.lt.s32.totalorder %s23, 0
        %s244 = scalar_select %p243, %s23, 0
        %s245 = smul.addr %s244, 2
        %s246 = smul.addr %s242, 2
        %s247 = sadd.s32 %s245, %s246
        %s248 = smul.addr %s247, 4
        %s249 = scalar_lea.vmem %s1, %s248
        %s250 = smul.u32 2, %s23
        %v252 = vld [vmem:[%s249] sm:$0x7]
        %254 = vrot.lane.b32.xlu0 %v252, 112
        %v255 = vpop.permute.xlu0 %254
        %vm257 = vcmask 1043328
        %258 = vst.msk [vmem:[#allocation2] sm:$0x7] %vm257, %v255
        %v259 = vld [vmem:[%s239] sm:$0x77]
        %260 = vst [vmem:[#allocation2 + $0x4] sm:$0x77] %v259
        %s261 = scalar_lea.vmem %s249, 4
        %v262 = vld [vmem:[%s261] sm:$0x7]
        %vm263 = vcmask 124928
        %264 = vst.msk [vmem:[#allocation2 + $0xc] sm:$0x7] %vm263, %v262
        %v265 = vlaneseq
        %v266 = vand.u32 %v265, 127
        %v267 = vadd.s32 %v266, 128
        %vm268 = vcmp.lt.s32.totalorder %v266, 0
        %v269 = vsub.s32 0, %v266
        %v270 = vsel %vm268, %v269, %v266
        %v271 = vshrl.u32 %v270, 4
        %v272 = vand.u32 %v270, 15
        %v273 = vsub.s32 0, %v272
        %v274 = vsel %vm268, %v273, %v272
        %vm275 = vcmp.lt.s32.totalorder %v267, 0
        %v276 = vsub.s32 0, %v267
        %v277 = vsel %vm275, %v276, %v267
        %v278 = vshrl.u32 %v277, 4
        %v279 = vand.u32 %v277, 15
        %v280 = vsub.s32 0, %v279
        %v281 = vsel %vm275, %v280, %v279
        %vm282 = vcmp.ne.s32.totalorder %v274, 0
        %vm283 = vcmp.ne.s32.totalorder %v281, 0
        %vm284 = vcmp.lt.s32.totalorder %v274, 0
        %vm285 = vcmp.lt.s32.totalorder %v281, 0
        %vm286 = vmand %vm284, %vm282
        %vm287 = vmand %vm285, %vm283
        %v288 = vadd.s32 %v274, 16
        %v289 = vadd.s32 %v281, 16
        %v290 = vsel %vm286, %v288, %v274
        %v291 = vsel %vm287, %v289, %v281
        %vm292 = vcmp.ne.s32.totalorder %v290, 0
        %vm293 = vcmp.ne.s32.totalorder %v291, 0
        %v294 = vsel %vm292, 1, 0
        %v295 = vsel %vm293, 1, 0
        %v296 = vcvt.s32.f32 %v294
        %v297 = vcvt.s32.f32 %v295
        %vm298 = vcmp.ne.s32.totalorder %v290, 15
        %vm299 = vcmp.ne.s32.totalorder %v291, 15
        %v300 = vsel %vm298, 1, 0
        %v301 = vsel %vm299, 1, 0
        %v302 = vcvt.s32.f32 %v300
        %v303 = vcvt.s32.f32 %v301
        %v304 = vld [vmem:[#allocation2] sm:$0x77]
        %v305 = vld [vmem:[#allocation2 + $0x8] sm:$0x7]
        %308 = vst [vmem:[#allocation1] ss:$2 sm:$0xff] %v304
        %s309 = scalar_lea.vmem [#allocation1], 16
        %310 = vst [vmem:[%s309] ss:$2 sm:$0xff] %v305
        %v311 = vld.sshfl [vmem:[#allocation1] sm:$0xff pattern:$0x75316420]
        %v312 = vld.sshfl [vmem:[#allocation1 + $0x8] sm:$0xff pattern:$0x75316420]
        %v313 = vld.sshfl [vmem:[#allocation1 + $0x10] sm:$0xff pattern:$0x75316420]
        %314 = vrot.lane.b32.xlu0 %v311, 16
        %v315 = vpop.permute.xlu0 %314
        %316 = vrot.lane.b32.xlu0 %v312, 16
        %v317 = vpop.permute.xlu0 %316
        %318 = vrot.lane.b32.xlu0 %v313, 16
        %v319 = vpop.permute.xlu0 %318
        %vm320 = vcmask 130048
        %v321 = vsel %vm320, %v315, %v317
        %v322 = vsel %vm320, %v317, %v319
        %325 = vrot.lane.b32.xlu0 %v321, 1
        %v326 = vpop.permute.xlu0 %325
        %327 = vrot.lane.b32.xlu0 %v322, 1
        %v328 = vpop.permute.xlu0 %327
        %vm329 = vcmp.lt.s32.totalorder %v266, 1
        %v330 = vsel %vm329, %v326, %v328
        %v331 = vsel %vm329, %v328, %v326
        %v332 = vmul.f32 %v331, %v296
        %v333 = vmul.f32 %v330, %v297
        %334 = vst [vmem:[#allocation1] ss:$2 sm:$0xff] %v304
        %s335 = scalar_lea.vmem [#allocation1], 16
        %336 = vst [vmem:[%s335] ss:$2 sm:$0xff] %v305
        %v337 = vld.sshfl [vmem:[#allocation1] sm:$0xff pattern:$0x75316420]
        %v338 = vld.sshfl [vmem:[#allocation1 + $0x8] sm:$0xff pattern:$0x75316420]
        %v339 = vld.sshfl [vmem:[#allocation1 + $0x10] sm:$0xff pattern:$0x75316420]
        %340 = vrot.lane.b32.xlu0 %v337, 16
        %v341 = vpop.permute.xlu0 %340
        %342 = vrot.lane.b32.xlu0 %v338, 16
        %v343 = vpop.permute.xlu0 %342
        %344 = vrot.lane.b32.xlu0 %v339, 16
        %v345 = vpop.permute.xlu0 %344
        %v346 = vsel %vm320, %v341, %v343
        %v347 = vsel %vm320, %v343, %v345
        %350 = vrot.lane.b32.xlu0 %v346, 127
        %v351 = vpop.permute.xlu0 %350
        %352 = vrot.lane.b32.xlu0 %v347, 127
        %v353 = vpop.permute.xlu0 %352
        %vm354 = vcmp.lt.s32.totalorder %v266, 127
        %v355 = vsel %vm354, %v351, %v353
        %v356 = vsel %vm354, %v353, %v351
        %v357 = vmul.f32 %v355, %v302
        %v358 = vmul.f32 %v356, %v303
        %v359 = vpack.c.bf16 %v333, %v332
        %v361 = vunpack.c.l.b16 %v359
        %v362 = vunpack.c.h.b16 %v359
        %v363 = vpack.c.b16 %v361, %v361
        %v364 = vpack.c.b16 %v362, %v362
        %vm367 = vcmask 1041408
        %vm368 = vsmask.f32 1280
        %vm369 = vmand %vm367, %vm368
        %v370 = vsel %vm369, %v363, 0
        %v371 = vsel %vm369, %v364, 0
        %v374 = vunpack.c.l.b16 %v370
        %v375 = vunpack.c.l.b16 %v371
        %v376 = vunpack.c.h.b16 %v370
        %v377 = vunpack.c.h.b16 %v371
        %v378 = vpack.c.b16 %v375, %v374
        %v379 = vpack.c.b16 %v377, %v376
        %382 = vst [vmem:[#allocation3] sm:$0xff] %v378
        %383 = vst [vmem:[#allocation3 + $0x8] sm:$0xff] %v379
        %384 = vst [vmem:[#allocation1] ss:$2 sm:$0xff] %v304
        %s385 = scalar_lea.vmem [#allocation1], 16
        %386 = vst [vmem:[%s385] ss:$2 sm:$0xff] %v305
        %v387 = vld.sshfl [vmem:[#allocation1] sm:$0xff pattern:$0x75316420]
        %v388 = vld.sshfl [vmem:[#allocation1 + $0x8] sm:$0xff pattern:$0x75316420]
        %v389 = vld.sshfl [vmem:[#allocation1 + $0x10] sm:$0xff pattern:$0x75316420]
        %v393 = vpack.c.bf16 %v388, %v387
        %v394 = vpack.c.bf16 %v389, %v389
        %v397 = vunpack.c.l.b16 %v393
        %v398 = vunpack.c.h.b16 %v393
        %v399 = vunpack.c.l.b16 %v394
        %v400 = vpack.c.b16 %v397, %v397
        %v401 = vpack.c.b16 %v398, %v398
        %v402 = vpack.c.b16 %v399, %v399
        %v406 = vsel %vm369, %v400, 0
        %v407 = vsel %vm369, %v401, 0
        %v408 = vsel %vm369, %v402, 0
        %v412 = vunpack.c.l.b16 %v406
        %v413 = vunpack.c.l.b16 %v407
        %v414 = vunpack.c.l.b16 %v408
        %v415 = vunpack.c.h.b16 %v406
        %v416 = vunpack.c.h.b16 %v407
        %v417 = vunpack.c.h.b16 %v408
        %v418 = vpack.c.b16 %v413, %v412
        %v419 = vpack.c.b16 %v414, %v414
        %v420 = vpack.c.b16 %v416, %v415
        %v421 = vpack.c.b16 %v417, %v417
        %422 = vrot.lane.b32.xlu0 %v418, 16
        %v423 = vpop.permute.xlu0 %422
        %424 = vrot.lane.b32.xlu0 %v419, 16
        %v425 = vpop.permute.xlu0 %424
        %426 = vrot.lane.b32.xlu0 %v420, 16
        %v427 = vpop.permute.xlu0 %426
        %428 = vrot.lane.b32.xlu0 %v421, 16
        %v429 = vpop.permute.xlu0 %428
        %v430 = vrot.slane %v423, 4
        %v431 = vrot.slane %v425, 4
        %v432 = vrot.slane %v427, 4
        %v433 = vrot.slane %v429, 4
        %vm434 = vcmask 1043456
        %v435 = vsel %vm434, %v430, %v431
        %vm436 = vcmask 130048
        %v437 = vsel %vm436, %v423, %v435
        %v438 = vsel %vm434, %v432, %v433
        %v439 = vsel %vm436, %v427, %v438
        %442 = vst [vmem:[#allocation3 + $0x10] sm:$0xff] %v437
        %443 = vst [vmem:[#allocation3 + $0x18] sm:$0xff] %v439
        %v444 = vpack.c.bf16 %v358, %v357
        %v446 = vunpack.c.l.b16 %v444
        %v447 = vunpack.c.h.b16 %v444
        %v448 = vpack.c.b16 %v446, %v446
        %v449 = vpack.c.b16 %v447, %v447
        %v452 = vsel %vm369, %v448, 0
        %v453 = vsel %vm369, %v449, 0
        %v456 = vunpack.c.l.b16 %v452
        %v457 = vunpack.c.l.b16 %v453
        %v458 = vunpack.c.h.b16 %v452
        %v459 = vunpack.c.h.b16 %v453
        %v460 = vpack.c.b16 %v457, %v456
        %v461 = vpack.c.b16 %v459, %v458
        %464 = vst [vmem:[#allocation3 + $0x20] sm:$0xff] %v460
        %465 = vst [vmem:[#allocation3 + $0x28] sm:$0xff] %v461
        %v466 = vld [vmem:[#allocation2 + $0x4] sm:$0x77]
        %468 = vst [vmem:[#allocation1] ss:$2 sm:$0xff] %v466
        %v469 = vld.sshfl [vmem:[#allocation1] sm:$0xff pattern:$0x75316420]
        %v470 = vld.sshfl [vmem:[#allocation1 + $0x8] sm:$0xff pattern:$0x75316420]
        %473 = vrot.lane.b32.xlu0 %v469, 1
        %v474 = vpop.permute.xlu0 %473
        %475 = vrot.lane.b32.xlu0 %v470, 1
        %v476 = vpop.permute.xlu0 %475
        %v477 = vsel %vm329, %v474, %v476
        %v478 = vsel %vm329, %v476, %v474
        %v479 = vmul.f32 %v478, %v296
        %v480 = vmul.f32 %v477, %v297
        %481 = vst [vmem:[#allocation1] ss:$2 sm:$0xff] %v466
        %v482 = vld.sshfl [vmem:[#allocation1] sm:$0xff pattern:$0x75316420]
        %v483 = vld.sshfl [vmem:[#allocation1 + $0x8] sm:$0xff pattern:$0x75316420]
        %486 = vrot.lane.b32.xlu0 %v482, 127
        %v487 = vpop.permute.xlu0 %486
        %488 = vrot.lane.b32.xlu0 %v483, 127
        %v489 = vpop.permute.xlu0 %488
        %v490 = vsel %vm354, %v487, %v489
        %v491 = vsel %vm354, %v489, %v487
        %v492 = vmul.f32 %v490, %v302
        %v493 = vmul.f32 %v491, %v303
        %v494 = vpack.c.bf16 %v480, %v479
        %v496 = vunpack.c.l.b16 %v494
        %v497 = vunpack.c.h.b16 %v494
        %v498 = vpack.c.b16 %v496, %v496
        %v499 = vpack.c.b16 %v497, %v497
        %v502 = vsel %vm369, %v498, 0
        %v503 = vsel %vm369, %v499, 0
        %v506 = vunpack.c.l.b16 %v502
        %v507 = vunpack.c.l.b16 %v503
        %v508 = vunpack.c.h.b16 %v502
        %v509 = vunpack.c.h.b16 %v503
        %v510 = vpack.c.b16 %v507, %v506
        %v511 = vpack.c.b16 %v509, %v508
        %514 = vst [vmem:[#allocation3 + $0x30] sm:$0xff] %v510
        %515 = vst [vmem:[#allocation3 + $0x38] sm:$0xff] %v511
        %516 = vst [vmem:[#allocation1] ss:$2 sm:$0xff] %v466
        %v517 = vld.sshfl [vmem:[#allocation1] sm:$0xff pattern:$0x75316420]
        %v518 = vld.sshfl [vmem:[#allocation1 + $0x8] sm:$0xff pattern:$0x75316420]
        %v521 = vpack.c.bf16 %v518, %v517
        %v523 = vunpack.c.l.b16 %v521
        %v524 = vunpack.c.h.b16 %v521
        %v525 = vpack.c.b16 %v523, %v523
        %v526 = vpack.c.b16 %v524, %v524
        %v529 = vsel %vm369, %v525, 0
        %v530 = vsel %vm369, %v526, 0
        %v533 = vunpack.c.l.b16 %v529
        %v534 = vunpack.c.l.b16 %v530
        %v535 = vunpack.c.h.b16 %v529
        %v536 = vunpack.c.h.b16 %v530
        %v537 = vpack.c.b16 %v534, %v533
        %v538 = vpack.c.b16 %v536, %v535
        %541 = vst [vmem:[#allocation3 + $0x40] sm:$0xff] %v537
        %542 = vst [vmem:[#allocation3 + $0x48] sm:$0xff] %v538
        %v543 = vpack.c.bf16 %v493, %v492
        %v545 = vunpack.c.l.b16 %v543
        %v546 = vunpack.c.h.b16 %v543
        %v547 = vpack.c.b16 %v545, %v545
        %v548 = vpack.c.b16 %v546, %v546
        %v551 = vsel %vm369, %v547, 0
        %v552 = vsel %vm369, %v548, 0
        %v555 = vunpack.c.l.b16 %v551
        %v556 = vunpack.c.l.b16 %v552
        %v557 = vunpack.c.h.b16 %v551
        %v558 = vunpack.c.h.b16 %v552
        %v559 = vpack.c.b16 %v556, %v555
        %v560 = vpack.c.b16 %v558, %v557
        %563 = vst [vmem:[#allocation3 + $0x50] sm:$0xff] %v559
        %564 = vst [vmem:[#allocation3 + $0x58] sm:$0xff] %v560
        %v565 = vld [vmem:[#allocation2 + $0x4] sm:$0x77]
        %v566 = vld [vmem:[#allocation2 + $0xc] sm:$0x7]
        %569 = vst [vmem:[#allocation1] ss:$2 sm:$0xff] %v565
        %s570 = scalar_lea.vmem [#allocation1], 16
        %571 = vst [vmem:[%s570] ss:$2 sm:$0xff] %v566
        %v572 = vld.sshfl [vmem:[#allocation1] sm:$0xff pattern:$0x75316420]
        %v573 = vld.sshfl [vmem:[#allocation1 + $0x8] sm:$0xff pattern:$0x75316420]
        %v574 = vld.sshfl [vmem:[#allocation1 + $0x10] sm:$0xff pattern:$0x75316420]
        %575 = vrot.lane.b32.xlu0 %v572, 112
        %v576 = vpop.permute.xlu0 %575
        %577 = vrot.lane.b32.xlu0 %v573, 112
        %v578 = vpop.permute.xlu0 %577
        %579 = vrot.lane.b32.xlu0 %v574, 112
        %v580 = vpop.permute.xlu0 %579
        %vm581 = vcmask 916480
        %v582 = vsel %vm581, %v576, %v578
        %v583 = vsel %vm581, %v578, %v580
        %586 = vrot.lane.b32.xlu0 %v582, 1
        %v587 = vpop.permute.xlu0 %586
        %588 = vrot.lane.b32.xlu0 %v583, 1
        %v589 = vpop.permute.xlu0 %588
        %v590 = vsel %vm329, %v587, %v589
        %v591 = vsel %vm329, %v589, %v587
        %v592 = vmul.f32 %v591, %v296
        %v593 = vmul.f32 %v590, %v297
        %594 = vst [vmem:[#allocation1] ss:$2 sm:$0xff] %v565
        %s595 = scalar_lea.vmem [#allocation1], 16
        %596 = vst [vmem:[%s595] ss:$2 sm:$0xff] %v566
        %v597 = vld.sshfl [vmem:[#allocation1] sm:$0xff pattern:$0x75316420]
        %v598 = vld.sshfl [vmem:[#allocation1 + $0x8] sm:$0xff pattern:$0x75316420]
        %v599 = vld.sshfl [vmem:[#allocation1 + $0x10] sm:$0xff pattern:$0x75316420]
        %600 = vrot.lane.b32.xlu0 %v597, 112
        %v601 = vpop.permute.xlu0 %600
        %602 = vrot.lane.b32.xlu0 %v598, 112
        %v603 = vpop.permute.xlu0 %602
        %604 = vrot.lane.b32.xlu0 %v599, 112
        %v605 = vpop.permute.xlu0 %604
        %v606 = vsel %vm581, %v601, %v603
        %v607 = vsel %vm581, %v603, %v605
        %610 = vrot.lane.b32.xlu0 %v606, 127
        %v611 = vpop.permute.xlu0 %610
        %612 = vrot.lane.b32.xlu0 %v607, 127
        %v613 = vpop.permute.xlu0 %612
        %v614 = vsel %vm354, %v611, %v613
        %v615 = vsel %vm354, %v613, %v611
        %v616 = vmul.f32 %v614, %v302
        %v617 = vmul.f32 %v615, %v303
        %v618 = vpack.c.bf16 %v593, %v592
        %v620 = vunpack.c.l.b16 %v618
        %v621 = vunpack.c.h.b16 %v618
        %v622 = vpack.c.b16 %v620, %v620
        %v623 = vpack.c.b16 %v621, %v621
        %v626 = vsel %vm369, %v622, 0
        %v627 = vsel %vm369, %v623, 0
        %v630 = vunpack.c.l.b16 %v626
        %v631 = vunpack.c.l.b16 %v627
        %v632 = vunpack.c.h.b16 %v626
        %v633 = vunpack.c.h.b16 %v627
        %v634 = vpack.c.b16 %v631, %v630
        %v635 = vpack.c.b16 %v633, %v632
        %638 = vst [vmem:[#allocation3 + $0x60] sm:$0xff] %v634
        %639 = vst [vmem:[#allocation3 + $0x68] sm:$0xff] %v635
        %640 = vst [vmem:[#allocation1] ss:$2 sm:$0xff] %v565
        %s641 = scalar_lea.vmem [#allocation1], 16
        %642 = vst [vmem:[%s641] ss:$2 sm:$0xff] %v566
        %v643 = vld.sshfl [vmem:[#allocation1] sm:$0xff pattern:$0x75316420]
        %v644 = vld.sshfl [vmem:[#allocation1 + $0x8] sm:$0xff pattern:$0x75316420]
        %v645 = vld.sshfl [vmem:[#allocation1 + $0x10] sm:$0xff pattern:$0x75316420]
        %v649 = vpack.c.bf16 %v644, %v643
        %v650 = vpack.c.bf16 %v645, %v645
        %v653 = vunpack.c.l.b16 %v649
        %v654 = vunpack.c.h.b16 %v649
        %v655 = vunpack.c.l.b16 %v650
        %v656 = vpack.c.b16 %v653, %v653
        %v657 = vpack.c.b16 %v654, %v654
        %v658 = vpack.c.b16 %v655, %v655
        %v662 = vsel %vm369, %v656, 0
        %v663 = vsel %vm369, %v657, 0
        %v664 = vsel %vm369, %v658, 0
        %v668 = vunpack.c.l.b16 %v662
        %v669 = vunpack.c.l.b16 %v663
        %v670 = vunpack.c.l.b16 %v664
        %v671 = vunpack.c.h.b16 %v662
        %v672 = vunpack.c.h.b16 %v663
        %v673 = vunpack.c.h.b16 %v664
        %v674 = vpack.c.b16 %v669, %v668
        %v675 = vpack.c.b16 %v670, %v670
        %v676 = vpack.c.b16 %v672, %v671
        %v677 = vpack.c.b16 %v673, %v673
        %678 = vrot.lane.b32.xlu0 %v674, 112
        %v679 = vpop.permute.xlu0 %678
        %680 = vrot.lane.b32.xlu0 %v675, 112
        %v681 = vpop.permute.xlu0 %680
        %682 = vrot.lane.b32.xlu0 %v676, 112
        %v683 = vpop.permute.xlu0 %682
        %684 = vrot.lane.b32.xlu0 %v677, 112
        %v685 = vpop.permute.xlu0 %684
        %v686 = vrot.slane %v679, 4
        %v687 = vrot.slane %v681, 4
        %v688 = vrot.slane %v683, 4
        %v689 = vrot.slane %v685, 4
        %v690 = vsel %vm434, %v686, %v687
        %vm691 = vcmask 916480
        %v692 = vsel %vm691, %v679, %v690
        %v693 = vsel %vm434, %v688, %v689
        %v694 = vsel %vm691, %v683, %v693
        %697 = vst [vmem:[#allocation3 + $0x70] sm:$0xff] %v692
        %698 = vst [vmem:[#allocation3 + $0x78] sm:$0xff] %v694
        %v699 = vpack.c.bf16 %v617, %v616
        %v701 = vunpack.c.l.b16 %v699
        %v702 = vunpack.c.h.b16 %v699
        %v703 = vpack.c.b16 %v701, %v701
        %v704 = vpack.c.b16 %v702, %v702
        %v707 = vsel %vm369, %v703, 0
        %v708 = vsel %vm369, %v704, 0
        %v711 = vunpack.c.l.b16 %v707
        %v712 = vunpack.c.l.b16 %v708
        %v713 = vunpack.c.h.b16 %v707
        %v714 = vunpack.c.h.b16 %v708
        %v715 = vpack.c.b16 %v712, %v711
        %v716 = vpack.c.b16 %v714, %v713
        %719 = vst [vmem:[#allocation3 + $0x80] sm:$0xff] %v715
        %720 = vst [vmem:[#allocation3 + $0x88] sm:$0xff] %v716
        %v721 = vld [vmem:[#allocation4] sm:$0xff]
        %v722 = vld [vmem:[#allocation4 + $0x8] sm:$0xff]
        %v723 = vld [vmem:[#allocation4 + $0x10] sm:$0xff]
        %v724 = vld [vmem:[#allocation4 + $0x18] sm:$0xff]
        %v725 = vld [vmem:[#allocation4 + $0x20] sm:$0xff]
        %v726 = vld [vmem:[#allocation4 + $0x28] sm:$0xff]
        %v727 = vld [vmem:[#allocation3] sm:$0xff]
        %v728 = vld [vmem:[#allocation3 + $0x8] sm:$0xff]
        %v729 = vld [vmem:[#allocation3 + $0x10] sm:$0xff]
        %v730 = vld [vmem:[#allocation3 + $0x18] sm:$0xff]
        %v731 = vld [vmem:[#allocation3 + $0x20] sm:$0xff]
        %v732 = vld [vmem:[#allocation3 + $0x28] sm:$0xff]
        %v733 = vld [vmem:[#allocation3 + $0x30] sm:$0xff]
        %v734 = vld [vmem:[#allocation3 + $0x38] sm:$0xff]
        %v735 = vld [vmem:[#allocation3 + $0x40] sm:$0xff]
        %v736 = vld [vmem:[#allocation3 + $0x48] sm:$0xff]
        %v737 = vld [vmem:[#allocation3 + $0x50] sm:$0xff]
        %v738 = vld [vmem:[#allocation3 + $0x58] sm:$0xff]
        %v739 = vld [vmem:[#allocation3 + $0x60] sm:$0xff]
        %v740 = vld [vmem:[#allocation3 + $0x68] sm:$0xff]
        %v741 = vld [vmem:[#allocation3 + $0x70] sm:$0xff]
        %v742 = vld [vmem:[#allocation3 + $0x78] sm:$0xff]
        %v743 = vld [vmem:[#allocation3 + $0x80] sm:$0xff]
        %v744 = vld [vmem:[#allocation3 + $0x88] sm:$0xff]
        %v751 = vunpack.c.l.b16 %v721
        %v752 = vunpack.c.h.b16 %v721
        %v753 = vunpack.c.l.b16 %v722
        %v754 = vunpack.c.h.b16 %v722
        %v755 = vunpack.c.l.b16 %v723
        %v756 = vunpack.c.h.b16 %v723
        %v757 = vunpack.c.l.b16 %v724
        %v758 = vunpack.c.h.b16 %v724
        %v759 = vunpack.c.l.b16 %v725
        %v760 = vunpack.c.h.b16 %v725
        %v761 = vunpack.c.l.b16 %v726
        %v762 = vunpack.c.h.b16 %v726
        %v763 = vpack.c.b16 %v753, %v751
        %v764 = vpack.c.b16 %v754, %v752
        %v765 = vpack.c.b16 %v757, %v755
        %v766 = vpack.c.b16 %v758, %v756
        %v767 = vpack.c.b16 %v761, %v759
        %v768 = vpack.c.b16 %v762, %v760
        %v790 = vunpack.c.l.b16 %v727
        %v791 = vunpack.c.h.b16 %v727
        %v792 = vunpack.c.l.b16 %v728
        %v793 = vunpack.c.h.b16 %v728
        %v794 = vunpack.c.l.b16 %v729
        %v795 = vunpack.c.h.b16 %v729
        %v796 = vunpack.c.l.b16 %v730
        %v797 = vunpack.c.h.b16 %v730
        %v798 = vunpack.c.l.b16 %v731
        %v799 = vunpack.c.h.b16 %v731
        %v800 = vunpack.c.l.b16 %v732
        %v801 = vunpack.c.h.b16 %v732
        %v802 = vunpack.c.l.b16 %v733
        %v803 = vunpack.c.h.b16 %v733
        %v804 = vunpack.c.l.b16 %v734
        %v805 = vunpack.c.h.b16 %v734
        %v806 = vunpack.c.l.b16 %v735
        %v807 = vunpack.c.h.b16 %v735
        %v808 = vunpack.c.l.b16 %v736
        %v809 = vunpack.c.h.b16 %v736
        %v810 = vunpack.c.l.b16 %v737
        %v811 = vunpack.c.h.b16 %v737
        %v812 = vunpack.c.l.b16 %v738
        %v813 = vunpack.c.h.b16 %v738
        %v814 = vunpack.c.l.b16 %v739
        %v815 = vunpack.c.h.b16 %v739
        %v816 = vunpack.c.l.b16 %v740
        %v817 = vunpack.c.h.b16 %v740
        %v818 = vunpack.c.l.b16 %v741
        %v819 = vunpack.c.h.b16 %v741
        %v820 = vunpack.c.l.b16 %v742
        %v821 = vunpack.c.h.b16 %v742
        %v822 = vunpack.c.l.b16 %v743
        %v823 = vunpack.c.h.b16 %v743
        %v824 = vunpack.c.l.b16 %v744
        %v825 = vunpack.c.h.b16 %v744
        %v826 = vpack.c.b16 %v792, %v790
        %v827 = vpack.c.b16 %v793, %v791
        %v828 = vpack.c.b16 %v796, %v794
        %v829 = vpack.c.b16 %v797, %v795
        %v830 = vpack.c.b16 %v800, %v798
        %v831 = vpack.c.b16 %v801, %v799
        %v832 = vpack.c.b16 %v804, %v802
        %v833 = vpack.c.b16 %v805, %v803
        %v834 = vpack.c.b16 %v808, %v806
        %v835 = vpack.c.b16 %v809, %v807
        %v836 = vpack.c.b16 %v812, %v810
        %v837 = vpack.c.b16 %v813, %v811
        %v838 = vpack.c.b16 %v816, %v814
        %v839 = vpack.c.b16 %v817, %v815
        %v840 = vpack.c.b16 %v820, %v818
        %v841 = vpack.c.b16 %v821, %v819
        %v842 = vpack.c.b16 %v824, %v822
        %v843 = vpack.c.b16 %v825, %v823
        %v863 = vsel %vm320, %v764, 0
        %v866 = vsel %vm320, %v766, 0
        %v869 = vsel %vm320, %v768, 0
        %871 = vmatpush.bf16.msra.mxu0 %v840
        %872 = vmatpush.bf16.msra.mxu0 %v838
        %873 = vmatpush.bf16.msra.mxu0 %v836
        %874 = vmatpush.bf16.msra.mxu0 %v834
        %875 = vmatpush.bf16.msra.mxu0 %v832
        %876 = vmatpush.bf16.msra.mxu0 %v830
        %877 = vmatpush.bf16.msra.mxu0 %v828
        %878 = vmatpush.bf16.msra.mxu0 %v826
        %879 = vmatmul.bf16.gmra.mxu0 %v763
        %v880 = vpop.f32.mrf.mxu0
        %v881 = vadd.f32 0.0, %v880
        %v882 = vpop.f32.mrf.mxu0
        %v883 = vadd.f32 0.0, %v882
        %884 = vmatmul.bf16.gmra.mxu0 %v765
        %v885 = vpop.f32.mrf.mxu0
        %v886 = vadd.f32 0.0, %v885
        %v887 = vpop.f32.mrf.mxu0
        %v888 = vadd.f32 0.0, %v887
        %889 = vmatmul.bf16.gmra.mxu0 %v767
        %v890 = vpop.f32.mrf.mxu0
        %v891 = vadd.f32 0.0, %v890
        %v892 = vpop.f32.mrf.mxu0
        %v893 = vadd.f32 0.0, %v892
        %894 = vdwg.mxu0
        %895 = vmatpush.bf16.msra.mxu0 0
        %896 = vmatpush.bf16.msra.mxu0 0
        %897 = vmatpush.bf16.msra.mxu0 0
        %898 = vmatpush.bf16.msra.mxu0 0
        %899 = vmatpush.bf16.msra.mxu0 0
        %900 = vmatpush.bf16.msra.mxu0 0
        %901 = vmatpush.bf16.msra.mxu0 0
        %902 = vmatpush.bf16.msra.mxu0 %v842
        %903 = vmatmul.bf16.gmra.mxu0 %v863
        %v904 = vpop.f32.mrf.mxu0
        %v905 = vadd.f32 %v881, %v904
        %v906 = vpop.f32.mrf.mxu0
        %v907 = vadd.f32 %v883, %v906
        %908 = vmatmul.bf16.gmra.mxu0 %v866
        %v909 = vpop.f32.mrf.mxu0
        %v910 = vadd.f32 %v886, %v909
        %v911 = vpop.f32.mrf.mxu0
        %v912 = vadd.f32 %v888, %v911
        %913 = vmatmul.bf16.gmra.mxu0 %v869
        %v914 = vpop.f32.mrf.mxu0
        %v915 = vadd.f32 %v891, %v914
        %v916 = vpop.f32.mrf.mxu0
        %v917 = vadd.f32 %v893, %v916
        %918 = vdwg.mxu0
        %919 = vmatpush.bf16.msra.mxu0 %v841
        %920 = vmatpush.bf16.msra.mxu0 %v839
        %921 = vmatpush.bf16.msra.mxu0 %v837
        %922 = vmatpush.bf16.msra.mxu0 %v835
        %923 = vmatpush.bf16.msra.mxu0 %v833
        %924 = vmatpush.bf16.msra.mxu0 %v831
        %925 = vmatpush.bf16.msra.mxu0 %v829
        %926 = vmatpush.bf16.msra.mxu0 %v827
        %927 = vmatmul.bf16.gmra.mxu0 %v763
        %v928 = vpop.f32.mrf.mxu0
        %v929 = vadd.f32 0.0, %v928
        %v930 = vpop.f32.mrf.mxu0
        %v931 = vadd.f32 0.0, %v930
        %932 = vmatmul.bf16.gmra.mxu0 %v765
        %v933 = vpop.f32.mrf.mxu0
        %v934 = vadd.f32 0.0, %v933
        %v935 = vpop.f32.mrf.mxu0
        %v936 = vadd.f32 0.0, %v935
        %937 = vmatmul.bf16.gmra.mxu0 %v767
        %v938 = vpop.f32.mrf.mxu0
        %v939 = vadd.f32 0.0, %v938
        %v940 = vpop.f32.mrf.mxu0
        %v941 = vadd.f32 0.0, %v940
        %942 = vdwg.mxu0
        %943 = vmatpush.bf16.msra.mxu0 0
        %944 = vmatpush.bf16.msra.mxu0 0
        %945 = vmatpush.bf16.msra.mxu0 0
        %946 = vmatpush.bf16.msra.mxu0 0
        %947 = vmatpush.bf16.msra.mxu0 0
        %948 = vmatpush.bf16.msra.mxu0 0
        %949 = vmatpush.bf16.msra.mxu0 0
        %950 = vmatpush.bf16.msra.mxu0 %v843
        %951 = vmatmul.bf16.gmra.mxu0 %v863
        %v952 = vpop.f32.mrf.mxu0
        %v953 = vadd.f32 %v929, %v952
        %v954 = vpop.f32.mrf.mxu0
        %v955 = vadd.f32 %v931, %v954
        %956 = vmatmul.bf16.gmra.mxu0 %v866
        %v957 = vpop.f32.mrf.mxu0
        %v958 = vadd.f32 %v934, %v957
        %v959 = vpop.f32.mrf.mxu0
        %v960 = vadd.f32 %v936, %v959
        %961 = vmatmul.bf16.gmra.mxu0 %v869
        %v962 = vpop.f32.mrf.mxu0
        %v963 = vadd.f32 %v939, %v962
        %v964 = vpop.f32.mrf.mxu0
        %v965 = vadd.f32 %v941, %v964
        %966 = vdwg.mxu0
        %967 = vst [vmem:[%s230] sm:$0xff] %v905
        %968 = vst [vmem:[%s230 + $0x8] sm:$0xff] %v953
        %969 = vst [vmem:[%s230 + $0x10] sm:$0xff] %v907
        %970 = vst [vmem:[%s230 + $0x18] sm:$0xff] %v955
        %971 = vst [vmem:[%s230 + $0x20] sm:$0xff] %v910
        %972 = vst [vmem:[%s230 + $0x28] sm:$0xff] %v958
        %973 = vst [vmem:[%s230 + $0x30] sm:$0xff] %v912
        %974 = vst [vmem:[%s230 + $0x38] sm:$0xff] %v960
        %975 = vst [vmem:[%s230 + $0x40] sm:$0xff] %v915
        %976 = vst [vmem:[%s230 + $0x48] sm:$0xff] %v963
        %977 = vst [vmem:[%s230 + $0x50] sm:$0xff] %v917
        %978 = vst [vmem:[%s230 + $0x58] sm:$0xff] %v965
        %s979 = sand.u32 %s117, 1
        %s980 = scalar_lea.sflag [#allocation6], %s979
        %s981 = sand.u32 %s117, 1
        %s982 = smul.addr %s981, 96
        %s983 = scalar_lea.vmem [#allocation7], %s982
        // Predicated region
        $region37: #{tpu_custom_call.1} parent=31 // pred_check
          %p984 = pneg %p127
        $region38: #{tpu_custom_call.1} parent=31 // pred_check_branch
          %986 = sbr.rel (%p984) target = $region40
        $region39: #{tpu_custom_call.1} parent=31 // pred_region
          %s987 = smul.u32 2, %s23
          %989 = vsyncadd %s980, 0
          %s990 = smul.addr %s22, 12
          %s991 = sadd.s32 %s987, %s990
          %s992 = smul.addr %s991, 8
          %s993 = scalar_lea.hbm %s3, %s992
          %s994 = sshll.u32 %s983, 4
          %s995 = int_to_ptr.vmem [resolvable:$true] %s994
          %s996 = sshll.u32 %s993, 4
          %s997 = int_to_ptr.hbm [resolvable:$true] %s996
          %1002 = dma.vmem_to_hbm [thread:$0]  %s995, 1536, %s997, %s980, 256, 256, 16
        $region40: #{tpu_custom_call.1} parent=31 // pred_fallthru
          _
      $region32: #{tpu_custom_call.1} parent=5 // pred_fallthru
        _
      %p1003 = scmp.le.s32.totalorder 2, %s13
      // Predicated region
      $region41: #{tpu_custom_call.1} parent=5 // pred_check
        %p1004 = pneg %p1003
      $region42: #{tpu_custom_call.1} parent=5 // pred_check_branch
        %1006 = sbr.rel (%p1004) target = $region44
      $region43: #{tpu_custom_call.1} parent=5 // pred_region
        %s1007 = ssub.s32 %s13, 2
        // Predicated region
        $region45: #{tpu_custom_call.1} parent=43 // pred_check
          %p1008 = pneg %p133
        $region46: #{tpu_custom_call.1} parent=43 // pred_check_branch
          %1010 = sbr.rel (%p1008) target = $region48
        $region47: #{tpu_custom_call.1} parent=43 // pred_region
          %s1011 = sand.u32 %s118, 1
          %s1012 = scalar_lea.sflag [#allocation6], %s1011
          %s1013 = sand.u32 %s118, 1
          %s1014 = smul.addr %s1013, 96
          %s1015 = scalar_lea.vmem [#allocation7], %s1014
          %1017 = dma.done %s1012, 1536
        $region48: #{tpu_custom_call.1} parent=43 // pred_fallthru
          _
      $region44: #{tpu_custom_call.1} parent=5 // pred_fallthru
        _
    $region6: #{tpu_custom_call.1} parent=1 // loop_footer
      %s17 = sadd.s32 1, %s13
    $region7: #{tpu_custom_call.1} parent=1 // loop_footer_branch
      %12 = sbr.rel target = $region3
    $region8: #{tpu_custom_call.1} parent=1 // loop_exit
      _
    %1018 = vsyncpa [#allocation5], 1
    %s1019 = scalar_lea.sflag [#allocation5], 1
    %1020 = vsyncpa %s1019, 1
    %1021 = vsyncpa [#allocation6], 1
    %s1022 = scalar_lea.sflag [#allocation6], 1
    %1023 = vsyncpa %s1022, 1

</llo_original>
